<compile_context>
chip_gen: v5e
topology: v5e:2x2
jax: 0.10.0
libtpu: 0.0.40
codegen_flags: <defaults>
</compile_context>

<pallas_src>
import functools

import jax
import jax.numpy as jnp
from jax import lax
from jax.experimental import pallas as pl
from jax.experimental.pallas import tpu as pltpu


def _round_up(n, m):
    return ((n + m - 1) // m) * m


def _coordconv_kernel(x_ref, w_ref, cb_ref, o_ref, *, K, PAD, Wp, HALO, P_pad, block_b):
    # x_ref : (block_b, C_in, L)      flattened, halo'd, zero-padded images (input dtype)
    # w_ref : (C_out, K*K*C_in)       fused im2col weight matrix (input dtype)
    # cb_ref: (C_out, P_pad)          precomputed coord-channel conv + bias (f32)
    # o_ref : (block_b, C_out, P_pad) conv output on the padded flat grid
    slabs = []
    for bi in range(block_b):
        taps = []
        for ki in range(K):
            for kj in range(K):
                off = HALO + (ki - PAD) * Wp + (kj - PAD)      # static lane offset per tap
                taps.append(x_ref[bi, :, off:off + P_pad])     # (C_in, P_pad)
        slabs.append(jnp.concatenate(taps, axis=0))            # (K*K*C_in, P_pad)
    xs = slabs[0] if block_b == 1 else jnp.concatenate(slabs, axis=1)

    # single MXU contraction per grid step: (C_out, KKC) @ (KKC, block_b*P_pad), f32 accumulate
    acc = jnp.dot(w_ref[...], xs, preferred_element_type=jnp.float32)

    cb = cb_ref[...]                                            # (C_out, P_pad) f32
    for bi in range(block_b):
        o_ref[bi] = (acc[:, bi * P_pad:(bi + 1) * P_pad] + cb).astype(o_ref.dtype)


def _coord_bias_map(w_oihw, bias, H, W, PAD):
    """Conv contribution of the (input-independent) coordinate channels, plus bias.

    Matches torch AddCoords: xx[i, j] = j / (x_dim - 1) * 2 - 1,
    yy[i, j] = i / (y_dim - 1) * 2 - 1 (torch's concat implicitly requires H == W).
    """
    C_out, C_tot, K, _ = w_oihw.shape
    C_in = C_tot - 2
    xx = (jnp.arange(W, dtype=jnp.float32) / (H - 1)) * 2.0 - 1.0
    yy = (jnp.arange(H, dtype=jnp.float32) / (W - 1)) * 2.0 - 1.0
    coord = jnp.stack(
        [jnp.broadcast_to(xx[None, :], (H, W)),
         jnp.broadcast_to(yy[:, None], (H, W))], axis=0)        # (2, H, W): [xx, yy]
    coord_p = jnp.pad(coord, ((0, 0), (PAD, PAD), (PAD, PAD)))
    w_f32 = w_oihw.astype(jnp.float32)
    acc = jnp.zeros((C_out, H, W), jnp.float32)
    for ki in range(K):
        for kj in range(K):
            patch = coord_p[:, ki:ki + H, kj:kj + W]            # (2, H, W)
            acc = acc + jnp.einsum("oc,chw->ohw", w_f32[:, C_in:, ki, kj], patch)
    return acc + bias.astype(jnp.float32).reshape(-1, 1, 1)     # (C_out, H, W)


def _default_block_b(B):
    # keep >= 2 grid steps (v7x megacore) while amortising per-step overhead
    if B <= 2:
        return 1
    for cand in (4, 3, 2):
        if B % cand == 0 and B // cand >= 2:
            return cand
    return 1


def make_coord_conv(w_oihw, bias, *, H, W, padding=1, block_b=None):
    """Precompute input-independent parameters once; returns forward(x_nchw)."""
    assert H == W and H > 1, "AddCoords (torch version) requires square spatial dims, H > 1"
    C_out, C_tot, K, K2 = w_oihw.shape
    assert K == K2
    C = C_tot - 2
    PAD = padding

    Hp, Wp = H + 2 * PAD, W + 2 * PAD
    P = Hp * Wp                               # flattened padded-grid size
    P_pad = _round_up(P, 128)                 # lane-dense output width
    HALO = PAD * Wp + PAD                     # max |flat shift| across the K*K taps
    R = -(-(P_pad + 2 * HALO) // Wp)          # padded row count so flat length covers all taps
    L = R * Wp                                # extended flat input length (full-dim block)
    assert R >= H + 2 * PAD

    # ---- input-independent prep (hoisted: once per model, not per call) ----
    # fused im2col weights: w2d[o, (ki*K + kj)*C + c] = w[o, c, ki, kj]
    w2d = jnp.transpose(w_oihw[:, :C], (0, 2, 3, 1)).reshape(C_out, K * K * C)
    cmap = _coord_bias_map(w_oihw, bias, H, W, PAD)             # (C_out, H, W) f32
    cb = jnp.pad(cmap, ((0, 0), (PAD, PAD), (PAD, PAD))).reshape(C_out, P)
    cb = jnp.pad(cb, ((0, 0), (0, P_pad - P)))                  # (C_out, P_pad) f32

    def forward(x_nchw):
        B, Cx, Hx, Wx = x_nchw.shape
        assert (Cx, Hx, Wx) == (C, H, W)
        bb = block_b or _default_block_b(B)
        assert B % bb == 0
        grid_b = B // bb

        # single layout pass in the NATIVE dtype: one pad, then a free trailing-dim reshape.
        # Original pixel (r, s) lands at padded (r + 2*PAD, s + 2*PAD); flattening the (R, Wp)
        # plane reproduces exactly the halo'd flat buffer x_ext[HALO + q] = x_padded_flat[q].
        x_ext = jnp.pad(
            x_nchw,
            ((0, 0), (0, 0), (2 * PAD, R - H - 2 * PAD), (2 * PAD, 0)),
        ).reshape(B, C, L)

        kernel = functools.partial(
            _coordconv_kernel, K=K, PAD=PAD, Wp=Wp, HALO=HALO, P_pad=P_pad, block_b=bb)

        # explicit VMEM budget: double-buffered x/out blocks + invariant operands + headroom
        itm = x_nchw.dtype.itemsize
        xbytes = bb * C * L * itm
        obytes = bb * C_out * P_pad * itm
        ibytes = C_out * K * K * C * itm + C_out * P_pad * 4
        vmem_limit = min(max(4 * (2 * (xbytes + obytes) + 2 * ibytes), 16 << 20), 64 << 20)

        out_flat = pl.pallas_call(
            kernel,
            out_shape=jax.ShapeDtypeStruct((B, C_out, P_pad), x_nchw.dtype),
            grid=(grid_b,),
            in_specs=[
                pl.BlockSpec((bb, C, L), lambda b: (b, 0, 0)),
                pl.BlockSpec((C_out, K * K * C), lambda b: (0, 0)),
                pl.BlockSpec((C_out, P_pad), lambda b: (0, 0)),
            ],
            out_specs=pl.BlockSpec((bb, C_out, P_pad), lambda b: (b, 0, 0)),
            compiler_params=pltpu.CompilerParams(
                dimension_semantics=("parallel",),   # both TCs on v7x; negligible on v5e/v6e
                vmem_limit_bytes=int(vmem_limit),
            ),
        )(x_ext, w2d.astype(x_nchw.dtype), cb)

        # valid region of the padded flat grid -> NCHW (border wrap garbage discarded here)
        out = out_flat[:, :, :P].reshape(B, C_out, Hp, Wp)[:, :, PAD:PAD + H, PAD:PAD + W]
        return out

    return forward


def _reference(x_nchw, w_oihw, bias, *, padding=1):
    """Pure-JAX reference mirroring torch AddCoords + nn.Conv2d."""
    B, C, H, W = x_nchw.shape
    ii, jj = jnp.meshgrid(jnp.arange(H), jnp.arange(W), indexing="ij")
    xx = (jj.astype(jnp.float32) / (H - 1)) * 2.0 - 1.0
    yy = (ii.astype(jnp.float32) / (W - 1)) * 2.0 - 1.0
    xx_b = jnp.broadcast_to(xx[None, None], (B, 1, H, W)).astype(x_nchw.dtype)
    yy_b = jnp.broadcast_to(yy[None, None], (B, 1, H, W)).astype(x_nchw.dtype)
    aug = jnp.concatenate([x_nchw, xx_b, yy_b], axis=1)
    out = lax.conv_general_dilated(
        aug.astype(jnp.float32), w_oihw.astype(jnp.float32), window_strides=(1, 1),
        padding=[(padding, padding), (padding, padding)],
        dimension_numbers=("NCHW", "OIHW", "NCHW"))
    return out + bias.reshape(1, -1, 1, 1)


if __name__ == "__main__":
    B, C, H, W = 2, 4, 16, 16
    C_out, K, PAD = 8, 3, 1

    key = jax.random.PRNGKey(0)
    kx, kw, kb = jax.random.split(key, 3)
    x = jax.random.normal(kx, (B, C, H, W), dtype=jnp.float32)
    w = 0.1 * jax.random.normal(kw, (C_out, C + 2, K, K), dtype=jnp.float32)
    bias = 0.1 * jax.random.normal(kb, (C_out,), dtype=jnp.float32)

    coord_conv = make_coord_conv(w, bias, H=H, W=W, padding=PAD)   # prep hoisted (once)
    fwd = jax.jit(coord_conv)
    out = jax.block_until_ready(fwd(x))

    ref = _reference(x, w, bias, padding=PAD)
    assert out.shape == (B, C_out, H, W), out.shape
    err = float(jnp.max(jnp.abs(out - ref)))
    assert err < 1e-4, err
    print("KERNEL_OK")
</pallas_src>

<mosaic_0001>
module attributes {stable_mosaic.version = 11 : i64} {
  func.func @_coordconv_kernel(%arg0: i32, %arg1: memref<1x4x432xf32, #tpu.memory_space<vmem>>, %arg2: memref<8x36xf32, #tpu.memory_space<vmem>>, %arg3: memref<8x384xf32, #tpu.memory_space<vmem>>, %arg4: memref<1x8x384xf32, #tpu.memory_space<vmem>>) attributes {dimension_semantics = [#tpu.dimension_semantics<parallel>], iteration_bounds = array<i64: 2>, scalar_prefetch = 0 : i64, scratch_operands = 0 : i64, tpu.core_type = #tpu.core_type<tc>, window_params = [{transform_indices = @transform_0, window_bounds = array<i64: 1, 4, 432>}, {pipeline_mode = #tpu.pipeline_mode<synchronous>, transform_indices = @transform_1, window_bounds = array<i64: 8, 36>}, {pipeline_mode = #tpu.pipeline_mode<synchronous>, transform_indices = @transform_2, window_bounds = array<i64: 8, 384>}, {transform_indices = @transform_3, window_bounds = array<i64: 1, 8, 384>}]} {
    %c0 = arith.constant 0 : index
    %c0_0 = arith.constant 0 : index
    %c0_1 = arith.constant 0 : index
    %0 = vector.load %arg1[%c0, %c0_0, %c0_1] : memref<1x4x432xf32, #tpu.memory_space<vmem>>, vector<1x4x384xf32>
    %1 = vector.shape_cast %0 : vector<1x4x384xf32> to vector<4x384xf32>
    %c0_2 = arith.constant 0 : index
    %c0_3 = arith.constant 0 : index
    %c1 = arith.constant 1 : index
    %2 = vector.load %arg1[%c0_2, %c0_3, %c1] : memref<1x4x432xf32, #tpu.memory_space<vmem>>, vector<1x4x384xf32>
    %3 = vector.shape_cast %2 : vector<1x4x384xf32> to vector<4x384xf32>
    %c0_4 = arith.constant 0 : index
    %c0_5 = arith.constant 0 : index
    %c2 = arith.constant 2 : index
    %4 = vector.load %arg1[%c0_4, %c0_5, %c2] : memref<1x4x432xf32, #tpu.memory_space<vmem>>, vector<1x4x384xf32>
    %5 = vector.shape_cast %4 : vector<1x4x384xf32> to vector<4x384xf32>
    %c0_6 = arith.constant 0 : index
    %c0_7 = arith.constant 0 : index
    %c18 = arith.constant 18 : index
    %6 = vector.load %arg1[%c0_6, %c0_7, %c18] : memref<1x4x432xf32, #tpu.memory_space<vmem>>, vector<1x4x384xf32>
    %7 = vector.shape_cast %6 : vector<1x4x384xf32> to vector<4x384xf32>
    %c0_8 = arith.constant 0 : index
    %c0_9 = arith.constant 0 : index
    %c19 = arith.constant 19 : index
    %8 = vector.load %arg1[%c0_8, %c0_9, %c19] : memref<1x4x432xf32, #tpu.memory_space<vmem>>, vector<1x4x384xf32>
    %9 = vector.shape_cast %8 : vector<1x4x384xf32> to vector<4x384xf32>
    %c0_10 = arith.constant 0 : index
    %c0_11 = arith.constant 0 : index
    %c20 = arith.constant 20 : index
    %10 = vector.load %arg1[%c0_10, %c0_11, %c20] : memref<1x4x432xf32, #tpu.memory_space<vmem>>, vector<1x4x384xf32>
    %11 = vector.shape_cast %10 : vector<1x4x384xf32> to vector<4x384xf32>
    %c0_12 = arith.constant 0 : index
    %c0_13 = arith.constant 0 : index
    %c36 = arith.constant 36 : index
    %12 = vector.load %arg1[%c0_12, %c0_13, %c36] : memref<1x4x432xf32, #tpu.memory_space<vmem>>, vector<1x4x384xf32>
    %13 = vector.shape_cast %12 : vector<1x4x384xf32> to vector<4x384xf32>
    %c0_14 = arith.constant 0 : index
    %c0_15 = arith.constant 0 : index
    %c37 = arith.constant 37 : index
    %14 = vector.load %arg1[%c0_14, %c0_15, %c37] : memref<1x4x432xf32, #tpu.memory_space<vmem>>, vector<1x4x384xf32>
    %15 = vector.shape_cast %14 : vector<1x4x384xf32> to vector<4x384xf32>
    %c0_16 = arith.constant 0 : index
    %c0_17 = arith.constant 0 : index
    %c38 = arith.constant 38 : index
    %16 = vector.load %arg1[%c0_16, %c0_17, %c38] : memref<1x4x432xf32, #tpu.memory_space<vmem>>, vector<1x4x384xf32>
    %17 = vector.shape_cast %16 : vector<1x4x384xf32> to vector<4x384xf32>
    %18 = tpu.concatenate %1, %3, %5, %7, %9, %11, %13, %15, %17 in 0 : vector<4x384xf32>, vector<4x384xf32>, vector<4x384xf32>, vector<4x384xf32>, vector<4x384xf32>, vector<4x384xf32>, vector<4x384xf32>, vector<4x384xf32>, vector<4x384xf32> -> vector<36x384xf32>
    %c0_18 = arith.constant 0 : index
    %c0_19 = arith.constant 0 : index
    %19 = vector.load %arg2[%c0_18, %c0_19] : memref<8x36xf32, #tpu.memory_space<vmem>>, vector<8x36xf32>
    %cst = arith.constant dense<0.000000e+00> : vector<8x384xf32>
    %20 = tpu.matmul %19, %18, %cst {dimension_numbers = #tpu.dot_dimension_numbers<[1], [0], [0], [1], [0, 0, 1, 1], [], []>} : vector<8x36xf32>, vector<36x384xf32>, vector<8x384xf32> -> vector<8x384xf32>
    %c0_20 = arith.constant 0 : index
    %c0_21 = arith.constant 0 : index
    %21 = vector.load %arg3[%c0_20, %c0_21] : memref<8x384xf32, #tpu.memory_space<vmem>>, vector<8x384xf32>
    %22 = arith.addf %20, %21 : vector<8x384xf32>
    %c0_22 = arith.constant 0 : index
    %c0_23 = arith.constant 0 : index
    %c0_24 = arith.constant 0 : index
    %23 = vector.load %arg4[%c0_22, %c0_23, %c0_24] : memref<1x8x384xf32, #tpu.memory_space<vmem>>, vector<1x8x384xf32>
    %24 = vector.shape_cast %23 : vector<1x8x384xf32> to vector<8x384xf32>
    %25 = vector.shape_cast %22 : vector<8x384xf32> to vector<1x8x384xf32>
    tpu.vector_store %arg4[%c0_22, %c0_23, %c0_24], %25 {strides = array<i32>} : memref<1x8x384xf32, #tpu.memory_space<vmem>>, vector<1x8x384xf32>,
    return
  }
  func.func @transform_0(%arg0: i32) -> (i32, i32, i32) {
    %c0_i32 = arith.constant 0 : i32
    %c0_i32_0 = arith.constant 0 : i32
    %c0_i32_1 = arith.constant 0 : i32
    return %arg0, %c0_i32, %c0_i32_0 : i32, i32, i32
  }
  func.func @transform_1(%arg0: i32) -> (i32, i32) {
    %c0_i32 = arith.constant 0 : i32
    %c0_i32_0 = arith.constant 0 : i32
    %c0_i32_1 = arith.constant 0 : i32
    return %c0_i32, %c0_i32_0 : i32, i32
  }
  func.func @transform_2(%arg0: i32) -> (i32, i32) {
    %c0_i32 = arith.constant 0 : i32
    %c0_i32_0 = arith.constant 0 : i32
    %c0_i32_1 = arith.constant 0 : i32
    return %c0_i32, %c0_i32_0 : i32, i32
  }
  func.func @transform_3(%arg0: i32) -> (i32, i32, i32) {
    %c0_i32 = arith.constant 0 : i32
    %c0_i32_0 = arith.constant 0 : i32
    %c0_i32_1 = arith.constant 0 : i32
    return %arg0, %c0_i32, %c0_i32_0 : i32, i32, i32
  }
}

</mosaic_0001>

<llo_original>
// kernel: forward.1
$region0: #{forward.1}
  #allocation0 [shape = 'u32[]', space=smem, size = 0x4, offset = 0x4, fixed_abs, tag = 'smem constant byte address 0x4 - core index']
  #allocation1 [shape = 'u32[72,128]{1,0:T(1,128)}', space=vmem, size = 0x9000, scoped, tag = 'internal scratch']
  %s0 = inlined_call_operand.vmem [shape: f32[2,4,432], index: 0, kind: input, shape index: {}]
  %s1 = inlined_call_operand.vmem [shape: f32[8,36], index: 1, kind: input, shape index: {}]
  %s2 = inlined_call_operand.vmem [shape: f32[8,384], index: 2, kind: input, shape index: {}]
  %s3 = inlined_call_operand.vmem [shape: f32[2,8,384], index: 3, kind: output, shape index: {}]
  %s4 = sld [smem:[#allocation0]]
  $region45: #{forward.1} parent=0
    _
  %s6 = ssub.s32 1, %s4
  %s7 = scalar_select 0, %s6, %s4
  loop: start=0, step=1, limit=4
  $region2: #{forward.1} parent=0 // loop_pre_header
    _
  $region3: #{forward.1} parent=0 // loop_header
    %s9 = sphi 0, %s13
    %p10 = scmp.ge.s32.totalorder %s9, 4
    %s19 = sphi 0, %s21
    %s22 = sphi 0, %s19
    %s23 = sphi 0, %s22
    %s39 = sphi 0, %s23
    %s43 = sphi 0, %s43
    %s45 = sphi 0, %s43
    %s46 = sphi 0, %s45
    %s60 = sphi 0, %s46
    %s64 = sphi 0, %s64
    %s66 = sphi 0, %s64
    %s67 = sphi 0, %s66
    %s81 = sphi 0, %s67
    %s87 = sphi 0, %s89
    %s90 = sphi 0, %s87
    %s91 = sphi 0, %s90
    %s107 = sphi 0, %s91
  $region4: #{forward.1} parent=0 // loop_header_branch
    %12 = sbr.rel (%p10) target = $region8
  $region5: #{forward.1} parent=0 // loop_body
    %s14 = ssub.s32 %s9, 1
    %s15 = ssub.s32 %s9, 2
    %s16 = sadd.s32 %s9, 1
    %s17 = ssub.s32 %s9, %s16
    %p18 = scmp.eq.s32.totalorder %s17, 0
    %s20 = sadd.s32 %s19, 1
    %s21 = scalar_select %p18, %s19, %s20
    %p24 = pneg %p18
    %p25 = scmp.eq.s32.totalorder %s9, 1
    %p26 = por %p24, %p25
    %p27 = scmp.ne.s32.totalorder %s19, %s22
    %p28 = scmp.eq.s32.totalorder %s9, 0
    %p29 = por %p27, %p28
    %p30 = scmp.ne.s32.totalorder %s19, %s22
    %p31 = scmp.eq.s32.totalorder %s14, 1
    %p32 = por %p30, %p31
    %p33 = scmp.ne.s32.totalorder %s22, %s23
    %p34 = scmp.eq.s32.totalorder %s14, 0
    %p35 = por %p33, %p34
    %p36 = scmp.ne.s32.totalorder %s22, %s23
    %p37 = scmp.eq.s32.totalorder %s15, 1
    %p38 = por %p36, %p37
    %p40 = scmp.ne.s32.totalorder %s23, %s39
    %p41 = scmp.eq.s32.totalorder %s15, 0
    %p42 = por %p40, %p41
    %s44 = sadd.s32 %s43, 1
    %p47 = scmp.eq.s32.totalorder %s9, 1
    %p48 = scmp.ne.s32.totalorder %s43, %s45
    %p49 = scmp.eq.s32.totalorder %s9, 0
    %p50 = por %p48, %p49
    %p51 = scmp.ne.s32.totalorder %s43, %s45
    %p52 = scmp.eq.s32.totalorder %s14, 1
    %p53 = por %p51, %p52
    %p54 = scmp.ne.s32.totalorder %s45, %s46
    %p55 = scmp.eq.s32.totalorder %s14, 0
    %p56 = por %p54, %p55
    %p57 = scmp.ne.s32.totalorder %s45, %s46
    %p58 = scmp.eq.s32.totalorder %s15, 1
    %p59 = por %p57, %p58
    %p61 = scmp.ne.s32.totalorder %s46, %s60
    %p62 = scmp.eq.s32.totalorder %s15, 0
    %p63 = por %p61, %p62
    %s65 = sadd.s32 %s64, 1
    %p68 = scmp.eq.s32.totalorder %s9, 1
    %p69 = scmp.ne.s32.totalorder %s64, %s66
    %p70 = scmp.eq.s32.totalorder %s9, 0
    %p71 = por %p69, %p70
    %p72 = scmp.ne.s32.totalorder %s64, %s66
    %p73 = scmp.eq.s32.totalorder %s14, 1
    %p74 = por %p72, %p73
    %p75 = scmp.ne.s32.totalorder %s66, %s67
    %p76 = scmp.eq.s32.totalorder %s14, 0
    %p77 = por %p75, %p76
    %p78 = scmp.ne.s32.totalorder %s66, %s67
    %p79 = scmp.eq.s32.totalorder %s15, 1
    %p80 = por %p78, %p79
    %p82 = scmp.ne.s32.totalorder %s67, %s81
    %p83 = scmp.eq.s32.totalorder %s15, 0
    %p84 = por %p82, %p83
    %s85 = ssub.s32 %s9, %s16
    %p86 = scmp.eq.s32.totalorder %s85, 0
    %s88 = sadd.s32 %s87, 1
    %s89 = scalar_select %p86, %s87, %s88
    %p92 = pneg %p86
    %p93 = scmp.eq.s32.totalorder %s9, 1
    %p94 = por %p92, %p93
    %p95 = scmp.ne.s32.totalorder %s87, %s90
    %p96 = scmp.eq.s32.totalorder %s9, 0
    %p97 = por %p95, %p96
    %p98 = scmp.ne.s32.totalorder %s87, %s90
    %p99 = scmp.eq.s32.totalorder %s14, 1
    %p100 = por %p98, %p99
    %p101 = scmp.ne.s32.totalorder %s90, %s91
    %p102 = scmp.eq.s32.totalorder %s14, 0
    %p103 = por %p101, %p102
    %p104 = scmp.ne.s32.totalorder %s90, %s91
    %p105 = scmp.eq.s32.totalorder %s15, 1
    %p106 = por %p104, %p105
    %p108 = scmp.ne.s32.totalorder %s91, %s107
    %p109 = scmp.eq.s32.totalorder %s15, 0
    %p110 = por %p108, %p109
    %p111 = scmp.le.s32.totalorder 1, %s9
    %p112 = scmp.lt.s32.totalorder %s9, 3
    %p113 = pnand %p111, %p112
    %p114 = pneg %p113
    // Predicated region
    $region9: #{forward.1} parent=5 // pred_check
      _
    $region10: #{forward.1} parent=5 // pred_check_branch
      %116 = sbr.rel (%p113) target = $region12
    $region11: #{forward.1} parent=5 // pred_region
      %s117 = ssub.s32 %s9, 1
      // Predicated region
      $region13: #{forward.1} parent=11 // pred_check
        %p118 = pneg %p56
      $region14: #{forward.1} parent=11 // pred_check_branch
        %120 = sbr.rel (%p118) target = $region16
      $region15: #{forward.1} parent=11 // pred_region
        _
      $region16: #{forward.1} parent=11 // pred_fallthru
        _
      // Predicated region
      $region17: #{forward.1} parent=11 // pred_check
        %p121 = pneg %p77
      $region18: #{forward.1} parent=11 // pred_check_branch
        %123 = sbr.rel (%p121) target = $region20
      $region19: #{forward.1} parent=11 // pred_region
        _
      $region20: #{forward.1} parent=11 // pred_fallthru
        _
    $region12: #{forward.1} parent=5 // pred_fallthru
      _
    %p124 = scmp.lt.s32.totalorder %s9, 2
    // Predicated region
    $region21: #{forward.1} parent=5 // pred_check
      %p125 = pneg %p124
    $region22: #{forward.1} parent=5 // pred_check_branch
      %127 = sbr.rel (%p125) target = $region24
    $region23: #{forward.1} parent=5 // pred_region
      // Predicated region
      $region25: #{forward.1} parent=23 // pred_check
        %p128 = pneg %p29
      $region26: #{forward.1} parent=23 // pred_check_branch
        %130 = sbr.rel (%p128) target = $region28
      $region27: #{forward.1} parent=23 // pred_region
        %p131 = scmp.lt.s32.totalorder %s9, 1
        %s132 = scalar_select %p131, %s9, 1
        %s133 = smul.addr %s132, 4
        %s134 = smul.addr %s133, 4
        %s135 = scalar_lea.vmem %s0, %s134
      $region28: #{forward.1} parent=23 // pred_fallthru
        _
    $region24: #{forward.1} parent=5 // pred_fallthru
      _
    %p136 = scmp.le.s32.totalorder 1, %s9
    %p137 = scmp.lt.s32.totalorder %s9, 3
    %p138 = pnand %p136, %p137
    %p139 = pneg %p138
    // Predicated region
    $region29: #{forward.1} parent=5 // pred_check
      _
    $region30: #{forward.1} parent=5 // pred_check_branch
      %141 = sbr.rel (%p138) target = $region32
    $region31: #{forward.1} parent=5 // pred_region
      %s142 = ssub.s32 %s9, 1
      %p143 = scmp.lt.s32.totalorder %s14, 1
      %s144 = scalar_select %p143, %s14, 1
      %s145 = smul.addr %s144, 4
      %s146 = smul.addr %s145, 4
      %s147 = scalar_lea.vmem %s0, %s146
      %p148 = pneg %p35
      %p149 = pneg %p32
      %p150 = pneg %p56
      %p151 = pneg %p53
      %p152 = pneg %p77
      %p153 = pneg %p74
      %p154 = pneg %p103
      %p155 = pneg %p100
      %p156 = scmp.lt.s32.totalorder %s14, 1
      %s157 = scalar_select %p156, %s14, 1
      %s158 = smul.addr %s157, 3
      %s159 = smul.addr %s158, 8
      %s160 = scalar_lea.vmem %s3, %s159
      %p161 = scmp.lt.s32.totalorder %s14, 1
      %s162 = scalar_select %p161, %s14, 1
      %s163 = smul.addr %s162, 4
      %s164 = smul.addr %s163, 4
      %s165 = scalar_lea.vmem %s0, %s164
      %p166 = scmp.lt.s32.totalorder %s14, 1
      %s167 = scalar_select %p166, %s14, 1
      %s168 = smul.addr %s167, 3
      %s169 = smul.addr %s168, 8
      %s170 = scalar_lea.vmem %s3, %s169
      %v171 = vld [vmem:[%s165] sm:$0xff]
      %v172 = vld [vmem:[%s165 + $0x8] sm:$0xf]
      %v173 = vld [vmem:[%s165 + $0x8] sm:$0xff]
      %176 = vst [vmem:[#allocation1] ss:$2 sm:$0xff] %v171
      %s177 = scalar_lea.vmem [#allocation1], 16
      %178 = vst [vmem:[%s177] ss:$2 sm:$0xff] %v172
      %v179 = vld.sshfl [vmem:[#allocation1] sm:$0xff pattern:$0x75316420]
      %v180 = vld.sshfl [vmem:[#allocation1 + $0x8] sm:$0xff pattern:$0x75316420]
      %v181 = vld.sshfl [vmem:[#allocation1 + $0x10] sm:$0xff pattern:$0x75316420]
      %s186 = scalar_lea.vmem [#allocation1], 1
      %187 = vst [vmem:[%s186] ss:$2 sm:$0xff] %v171
      %s188 = scalar_lea.vmem [#allocation1], 17
      %189 = vst [vmem:[%s188] ss:$2 sm:$0xff] %v173
      %v190 = vld.sshfl [vmem:[#allocation1] sm:$0xff pattern:$0x75316420]
      %v191 = vld.sshfl [vmem:[#allocation1 + $0x8] sm:$0xff pattern:$0x75316420]
      %v192 = vld.sshfl [vmem:[#allocation1 + $0x10] sm:$0xff pattern:$0x75316420]
      %v193 = vld.sshfl [vmem:[#allocation1 + $0x18] sm:$0xff pattern:$0x75316420]
      %194 = vrot.lane.b32.xlu0 %v190, 127
      %v195 = vpop.permute.xlu0 %194
      %196 = vrot.lane.b32.xlu0 %v191, 127
      %v197 = vpop.permute.xlu0 %196
      %198 = vrot.lane.b32.xlu0 %v192, 127
      %v199 = vpop.permute.xlu0 %198
      %200 = vrot.lane.b32.xlu0 %v193, 127
      %v201 = vpop.permute.xlu0 %200
      %vm202 = vcmask 1039360
      %v203 = vsel %vm202, %v195, %v197
      %v204 = vsel %vm202, %v197, %v199
      %v205 = vsel %vm202, %v199, %v201
      %209 = vst [vmem:[#allocation1] ss:$2 sm:$0xff] %v171
      %s210 = scalar_lea.vmem [#allocation1], 16
      %211 = vst [vmem:[%s210] ss:$2 sm:$0xff] %v173
      %v212 = vld.sshfl [vmem:[#allocation1] sm:$0xff pattern:$0x75316420]
      %v213 = vld.sshfl [vmem:[#allocation1 + $0x8] sm:$0xff pattern:$0x75316420]
      %v214 = vld.sshfl [vmem:[#allocation1 + $0x10] sm:$0xff pattern:$0x75316420]
      %v215 = vld.sshfl [vmem:[#allocation1 + $0x18] sm:$0xff pattern:$0x75316420]
      %216 = vrot.lane.b32.xlu0 %v212, 126
      %v217 = vpop.permute.xlu0 %216
      %218 = vrot.lane.b32.xlu0 %v213, 126
      %v219 = vpop.permute.xlu0 %218
      %220 = vrot.lane.b32.xlu0 %v214, 126
      %v221 = vpop.permute.xlu0 %220
      %222 = vrot.lane.b32.xlu0 %v215, 126
      %v223 = vpop.permute.xlu0 %222
      %vm224 = vcmask 1031168
      %v225 = vsel %vm224, %v217, %v219
      %v226 = vsel %vm224, %v219, %v221
      %v227 = vsel %vm224, %v221, %v223
      %s231 = scalar_lea.vmem [#allocation1], 1
      %232 = vst [vmem:[%s231] ss:$2 sm:$0xff] %v171
      %s233 = scalar_lea.vmem [#allocation1], 17
      %234 = vst [vmem:[%s233] ss:$2 sm:$0xff] %v173
      %v235 = vld.sshfl [vmem:[#allocation1] sm:$0xff pattern:$0x75316420]
      %v236 = vld.sshfl [vmem:[#allocation1 + $0x8] sm:$0xff pattern:$0x75316420]
      %v237 = vld.sshfl [vmem:[#allocation1 + $0x10] sm:$0xff pattern:$0x75316420]
      %v238 = vld.sshfl [vmem:[#allocation1 + $0x18] sm:$0xff pattern:$0x75316420]
      %239 = vrot.lane.b32.xlu0 %v235, 110
      %v240 = vpop.permute.xlu0 %239
      %241 = vrot.lane.b32.xlu0 %v236, 110
      %v242 = vpop.permute.xlu0 %241
      %243 = vrot.lane.b32.xlu0 %v237, 110
      %v244 = vpop.permute.xlu0 %243
      %245 = vrot.lane.b32.xlu0 %v238, 110
      %v246 = vpop.permute.xlu0 %245
      %vm247 = vcmask 900096
      %v248 = vsel %vm247, %v240, %v242
      %v249 = vsel %vm247, %v242, %v244
      %v250 = vsel %vm247, %v244, %v246
      %254 = vst [vmem:[#allocation1] ss:$2 sm:$0xff] %v171
      %s255 = scalar_lea.vmem [#allocation1], 16
      %256 = vst [vmem:[%s255] ss:$2 sm:$0xff] %v173
      %v257 = vld.sshfl [vmem:[#allocation1] sm:$0xff pattern:$0x75316420]
      %v258 = vld.sshfl [vmem:[#allocation1 + $0x8] sm:$0xff pattern:$0x75316420]
      %v259 = vld.sshfl [vmem:[#allocation1 + $0x10] sm:$0xff pattern:$0x75316420]
      %v260 = vld.sshfl [vmem:[#allocation1 + $0x18] sm:$0xff pattern:$0x75316420]
      %261 = vrot.lane.b32.xlu0 %v257, 109
      %v262 = vpop.permute.xlu0 %261
      %263 = vrot.lane.b32.xlu0 %v258, 109
      %v264 = vpop.permute.xlu0 %263
      %265 = vrot.lane.b32.xlu0 %v259, 109
      %v266 = vpop.permute.xlu0 %265
      %267 = vrot.lane.b32.xlu0 %v260, 109
      %v268 = vpop.permute.xlu0 %267
      %vm269 = vcmask 891904
      %v270 = vsel %vm269, %v262, %v264
      %v271 = vsel %vm269, %v264, %v266
      %v272 = vsel %vm269, %v266, %v268
      %s276 = scalar_lea.vmem [#allocation1], 1
      %277 = vst [vmem:[%s276] ss:$2 sm:$0xff] %v171
      %s278 = scalar_lea.vmem [#allocation1], 17
      %279 = vst [vmem:[%s278] ss:$2 sm:$0xff] %v173
      %v280 = vld.sshfl [vmem:[#allocation1] sm:$0xff pattern:$0x75316420]
      %v281 = vld.sshfl [vmem:[#allocation1 + $0x8] sm:$0xff pattern:$0x75316420]
      %v282 = vld.sshfl [vmem:[#allocation1 + $0x10] sm:$0xff pattern:$0x75316420]
      %v283 = vld.sshfl [vmem:[#allocation1 + $0x18] sm:$0xff pattern:$0x75316420]
      %284 = vrot.lane.b32.xlu0 %v280, 108
      %v285 = vpop.permute.xlu0 %284
      %286 = vrot.lane.b32.xlu0 %v281, 108
      %v287 = vpop.permute.xlu0 %286
      %288 = vrot.lane.b32.xlu0 %v282, 108
      %v289 = vpop.permute.xlu0 %288
      %290 = vrot.lane.b32.xlu0 %v283, 108
      %v291 = vpop.permute.xlu0 %290
      %vm292 = vcmask 883712
      %v293 = vsel %vm292, %v285, %v287
      %v294 = vsel %vm292, %v287, %v289
      %v295 = vsel %vm292, %v289, %v291
      %299 = vst [vmem:[#allocation1] ss:$2 sm:$0xff] %v171
      %s300 = scalar_lea.vmem [#allocation1], 16
      %301 = vst [vmem:[%s300] ss:$2 sm:$0xff] %v173
      %v302 = vld.sshfl [vmem:[#allocation1] sm:$0xff pattern:$0x75316420]
      %v303 = vld.sshfl [vmem:[#allocation1 + $0x8] sm:$0xff pattern:$0x75316420]
      %v304 = vld.sshfl [vmem:[#allocation1 + $0x10] sm:$0xff pattern:$0x75316420]
      %v305 = vld.sshfl [vmem:[#allocation1 + $0x18] sm:$0xff pattern:$0x75316420]
      %306 = vrot.lane.b32.xlu0 %v302, 92
      %v307 = vpop.permute.xlu0 %306
      %308 = vrot.lane.b32.xlu0 %v303, 92
      %v309 = vpop.permute.xlu0 %308
      %310 = vrot.lane.b32.xlu0 %v304, 92
      %v311 = vpop.permute.xlu0 %310
      %312 = vrot.lane.b32.xlu0 %v305, 92
      %v313 = vpop.permute.xlu0 %312
      %vm314 = vcmask 752640
      %v315 = vsel %vm314, %v307, %v309
      %v316 = vsel %vm314, %v309, %v311
      %v317 = vsel %vm314, %v311, %v313
      %s321 = scalar_lea.vmem [#allocation1], 1
      %322 = vst [vmem:[%s321] ss:$2 sm:$0xff] %v171
      %s323 = scalar_lea.vmem [#allocation1], 17
      %324 = vst [vmem:[%s323] ss:$2 sm:$0xff] %v173
      %v325 = vld.sshfl [vmem:[#allocation1] sm:$0xff pattern:$0x75316420]
      %v326 = vld.sshfl [vmem:[#allocation1 + $0x8] sm:$0xff pattern:$0x75316420]
      %v327 = vld.sshfl [vmem:[#allocation1 + $0x10] sm:$0xff pattern:$0x75316420]
      %v328 = vld.sshfl [vmem:[#allocation1 + $0x18] sm:$0xff pattern:$0x75316420]
      %329 = vrot.lane.b32.xlu0 %v325, 91
      %v330 = vpop.permute.xlu0 %329
      %331 = vrot.lane.b32.xlu0 %v326, 91
      %v332 = vpop.permute.xlu0 %331
      %333 = vrot.lane.b32.xlu0 %v327, 91
      %v334 = vpop.permute.xlu0 %333
      %335 = vrot.lane.b32.xlu0 %v328, 91
      %v336 = vpop.permute.xlu0 %335
      %vm337 = vcmask 744448
      %v338 = vsel %vm337, %v330, %v332
      %v339 = vsel %vm337, %v332, %v334
      %v340 = vsel %vm337, %v334, %v336
      %344 = vst [vmem:[#allocation1] ss:$2 sm:$0xff] %v171
      %s345 = scalar_lea.vmem [#allocation1], 16
      %346 = vst [vmem:[%s345] ss:$2 sm:$0xff] %v173
      %v347 = vld.sshfl [vmem:[#allocation1] sm:$0xff pattern:$0x75316420]
      %v348 = vld.sshfl [vmem:[#allocation1 + $0x8] sm:$0xff pattern:$0x75316420]
      %v349 = vld.sshfl [vmem:[#allocation1 + $0x10] sm:$0xff pattern:$0x75316420]
      %v350 = vld.sshfl [vmem:[#allocation1 + $0x18] sm:$0xff pattern:$0x75316420]
      %351 = vrot.lane.b32.xlu0 %v347, 90
      %v352 = vpop.permute.xlu0 %351
      %353 = vrot.lane.b32.xlu0 %v348, 90
      %v354 = vpop.permute.xlu0 %353
      %355 = vrot.lane.b32.xlu0 %v349, 90
      %v356 = vpop.permute.xlu0 %355
      %357 = vrot.lane.b32.xlu0 %v350, 90
      %v358 = vpop.permute.xlu0 %357
      %vm359 = vcmask 736256
      %v360 = vsel %vm359, %v352, %v354
      %v361 = vsel %vm359, %v354, %v356
      %v362 = vsel %vm359, %v356, %v358
      %vm363 = vcmask 1043456
      %v364 = vsel %vm363, %v179, %v203
      %v365 = vsel %vm363, %v180, %v204
      %v366 = vsel %vm363, %v181, %v205
      %v367 = vsel %vm363, %v225, %v248
      %v368 = vsel %vm363, %v226, %v249
      %v369 = vsel %vm363, %v227, %v250
      %v370 = vsel %vm363, %v270, %v293
      %v371 = vsel %vm363, %v271, %v294
      %v372 = vsel %vm363, %v272, %v295
      %v373 = vsel %vm363, %v315, %v338
      %v374 = vsel %vm363, %v316, %v339
      %v375 = vsel %vm363, %v317, %v340
      %v376 = vld [vmem:[%s1] sm:$0xff]
      %v377 = vld [vmem:[%s2] sm:$0xff]
      %v378 = vld [vmem:[%s2 + $0x8] sm:$0xff]
      %v379 = vld [vmem:[%s2 + $0x10] sm:$0xff]
      %vm380 = vcmask 293888
      %v382 = vsel %vm380, %v376, 0
      %v384 = vsel %vm363, %v360, 0
      %v386 = vsel %vm363, %v361, 0
      %v388 = vsel %vm363, %v362, 0
      %390 = vmatpush.msra.mxu0 0.0
      %391 = vmatpush.msra.mxu0 0.0
      %392 = vmatpush.msra.mxu0 0.0
      %393 = vmatpush.msra.mxu0 0.0
      %394 = vmatpush.msra.mxu0 0.0
      %395 = vmatpush.msra.mxu0 0.0
      %396 = vmatpush.msra.mxu0 0.0
      %397 = vmatpush.msra.mxu0 0.0
      %398 = vmatpush.msra.mxu0 0.0
      %399 = vmatpush.msra.mxu0 0.0
      %400 = vmatpush.msra.mxu0 0.0
      %401 = vmatpush.msra.mxu0 %v384
      %402 = vmatpush.msra.mxu0 %v373
      %403 = vmatpush.msra.mxu0 %v370
      %404 = vmatpush.msra.mxu0 %v367
      %405 = vmatpush.msra.mxu0 %v364
      %406 = vmatmul.f32.gmra.mxu0 %v382
      %v407 = vpop.f32.mrf.mxu0
      %v408 = vadd.f32 %v377, %v407
      %409 = vdwg.mxu0
      %410 = vmatpush.msra.mxu0 0.0
      %411 = vmatpush.msra.mxu0 0.0
      %412 = vmatpush.msra.mxu0 0.0
      %413 = vmatpush.msra.mxu0 0.0
      %414 = vmatpush.msra.mxu0 0.0
      %415 = vmatpush.msra.mxu0 0.0
      %416 = vmatpush.msra.mxu0 0.0
      %417 = vmatpush.msra.mxu0 0.0
      %418 = vmatpush.msra.mxu0 0.0
      %419 = vmatpush.msra.mxu0 0.0
      %420 = vmatpush.msra.mxu0 0.0
      %421 = vmatpush.msra.mxu0 %v386
      %422 = vmatpush.msra.mxu0 %v374
      %423 = vmatpush.msra.mxu0 %v371
      %424 = vmatpush.msra.mxu0 %v368
      %425 = vmatpush.msra.mxu0 %v365
      %426 = vmatmul.f32.gmra.mxu0 %v382
      %v427 = vpop.f32.mrf.mxu0
      %v428 = vadd.f32 %v378, %v427
      %429 = vdwg.mxu0
      %430 = vmatpush.msra.mxu0 0.0
      %431 = vmatpush.msra.mxu0 0.0
      %432 = vmatpush.msra.mxu0 0.0
      %433 = vmatpush.msra.mxu0 0.0
      %434 = vmatpush.msra.mxu0 0.0
      %435 = vmatpush.msra.mxu0 0.0
      %436 = vmatpush.msra.mxu0 0.0
      %437 = vmatpush.msra.mxu0 0.0
      %438 = vmatpush.msra.mxu0 0.0
      %439 = vmatpush.msra.mxu0 0.0
      %440 = vmatpush.msra.mxu0 0.0
      %441 = vmatpush.msra.mxu0 %v388
      %442 = vmatpush.msra.mxu0 %v375
      %443 = vmatpush.msra.mxu0 %v372
      %444 = vmatpush.msra.mxu0 %v369
      %445 = vmatpush.msra.mxu0 %v366
      %446 = vmatmul.f32.gmra.mxu0 %v382
      %v447 = vpop.f32.mrf.mxu0
      %v448 = vadd.f32 %v379, %v447
      %449 = vdwg.mxu0
      %450 = vst [vmem:[%s170] sm:$0xff] %v408
      %451 = vst [vmem:[%s170 + $0x8] sm:$0xff] %v428
      %452 = vst [vmem:[%s170 + $0x10] sm:$0xff] %v448
      %p453 = scmp.lt.s32.totalorder %s14, 1
      %s454 = scalar_select %p453, %s14, 1
      %s455 = smul.addr %s454, 3
      %s456 = smul.addr %s455, 8
      %s457 = scalar_lea.vmem %s3, %s456
      // Predicated region
      $region33: #{forward.1} parent=31 // pred_check
        %p458 = pneg %p100
      $region34: #{forward.1} parent=31 // pred_check_branch
        %460 = sbr.rel (%p458) target = $region36
      $region35: #{forward.1} parent=31 // pred_region
        _
      $region36: #{forward.1} parent=31 // pred_fallthru
        _
    $region32: #{forward.1} parent=5 // pred_fallthru
      _
    %p461 = scmp.le.s32.totalorder 2, %s9
    // Predicated region
    $region37: #{forward.1} parent=5 // pred_check
      %p462 = pneg %p461
    $region38: #{forward.1} parent=5 // pred_check_branch
      %464 = sbr.rel (%p462) target = $region40
    $region39: #{forward.1} parent=5 // pred_region
      %s465 = ssub.s32 %s9, 2
      // Predicated region
      $region41: #{forward.1} parent=39 // pred_check
        %p466 = pneg %p106
      $region42: #{forward.1} parent=39 // pred_check_branch
        %468 = sbr.rel (%p466) target = $region44
      $region43: #{forward.1} parent=39 // pred_region
        %p469 = scmp.lt.s32.totalorder %s15, 1
        %s470 = scalar_select %p469, %s15, 1
        %s471 = smul.addr %s470, 3
        %s472 = smul.addr %s471, 8
        %s473 = scalar_lea.vmem %s3, %s472
      $region44: #{forward.1} parent=39 // pred_fallthru
        _
    $region40: #{forward.1} parent=5 // pred_fallthru
      _
  $region6: #{forward.1} parent=0 // loop_footer
    %s13 = sadd.s32 1, %s9
  $region7: #{forward.1} parent=0 // loop_footer_branch
    %8 = sbr.rel target = $region3
  $region8: #{forward.1} parent=0 // loop_exit
    _

</llo_original>
